<compile_context>
chip_gen: v6e
topology: v6e:2x2x1
jax: 0.10.0
libtpu: 0.0.40
codegen_flags: <defaults>
</compile_context>

<pallas_src>
import functools

import jax
import jax.numpy as jnp
from jax import lax
from jax.experimental import pallas as pl
from jax.experimental.pallas import tpu as pltpu


def _round_up(x, m):
    return (x + m - 1) // m * m


def _cdiv(a, b):
    return -(-a // b)


# Keep the VMEM-resident (TM, S_pad) output block (plus softmax temporaries)
# comfortably inside v7x's 64 MiB VMEM.
_OUT_BLOCK_BUDGET_BYTES = 8 * 1024 * 1024


# ----------------------------- kernels -------------------------------------


def _finalize_softmax(seq_len, energies, out_ref):
    """Numerically-stable softmax over lanes; masks padded lanes only when the
    sequence is actually padded (static, trace-time check)."""
    if seq_len != energies.shape[-1]:
        lane = lax.broadcasted_iota(jnp.int32, energies.shape, dimension=1)
        energies = jnp.where(lane < seq_len, energies, -jnp.inf)
    m = jnp.max(energies, axis=-1, keepdims=True)
    p = jnp.exp(energies - m)
    denom = jnp.sum(p, axis=-1, keepdims=True)
    # TODO(synk): flip to pl.reciprocal(approx=True) (EUP vrcp, free slot) once
    # ~1e-4 weight error is acceptable; kept exact for PyTorch parity.
    out_ref[...] = p * pl.reciprocal(denom, approx=False)


def _emit_scores(seq_len, n_s, q, hist_ref, out_ref):
    """scores for the current S tile; softmax once all S tiles of this query
    tile have been written into the resident output block."""
    ts = hist_ref.shape[-1]
    energies = jnp.dot(q, hist_ref[...], preferred_element_type=jnp.float32)
    if n_s == 1:
        _finalize_softmax(seq_len, energies, out_ref)
    else:
        s = pl.program_id(1)
        start = pl.multiple_of(s * ts, ts)
        out_ref[:, pl.ds(start, ts)] = energies

        @pl.when(s == n_s - 1)
        def _():
            _finalize_softmax(seq_len, out_ref[...], out_ref)


def _attn_qk_kernel(seq_len, n_s, q_ref, hist_ref, out_ref):
    """'dot' / 'concat': query already (pre-)projected, e_i = q . h_i."""
    _emit_scores(seq_len, n_s, q_ref[...], hist_ref, out_ref)


def _attn_general_kernel(seq_len, n_s, hidden_ref, w_ref, hist_ref, out_ref,
                         q_ref):
    """'general': e_i = hidden . (W h_i + b) == (hidden @ W) . h_i
    (+ hidden . b, which is a per-row constant and cancels under softmax).
    The projection runs once per query tile (s == 0) and is reused across
    sequence tiles via a VMEM scratch."""
    @pl.when(pl.program_id(1) == 0)
    def _():
        q_ref[...] = jnp.dot(hidden_ref[...], w_ref[...],
                             preferred_element_type=jnp.float32)
    _emit_scores(seq_len, n_s, q_ref[...], hist_ref, out_ref)


# ----------------------------- pallas driver --------------------------------


def _run_attention(kernel_fn, query, extras, history, S, *, q_scratch=False):
    """query: (M, H) f32; extras: small grid-invariant operands passed whole;
    history: (S, H) f32.  Returns (M, S) softmax attention weights."""
    M, H = query.shape
    # TODO(synk): guard seq_len == 0 (all -inf row -> NaN) if that is possible.
    S_pad = _round_up(max(S, 1), 128)          # lane-dense output stores
    # Pre-transpose so S is the lane (fast) axis of the RHS and the output.
    hist_t = history.T                          # (H, S)
    if S_pad != S:
        hist_t = jnp.pad(hist_t, ((0, 0), (0, S_pad - S)))

    # Query tile: aim for >= 2 tiles so ("parallel",) splits across v7x's two
    # TensorCores; cap TM so the resident (TM, S_pad) output block stays small.
    M_pad = _round_up(M, 8)
    tm = min(128, _round_up(_cdiv(M_pad, 2), 8))
    tm_cap = max(8, (_OUT_BLOCK_BUDGET_BYTES // (4 * S_pad)) // 8 * 8)
    TM = max(8, min(tm, tm_cap))
    M_pad = _round_up(M_pad, TM)
    if M_pad != M:
        query = jnp.pad(query, ((0, M_pad - M), (0, 0)))

    TS = min(S_pad, 512)                        # sequence tile for the history
    n_s = S_pad // TS
    grid = (M_pad // TM, n_s)

    def shared_spec(shape):
        return pl.BlockSpec(shape, lambda i, s: tuple(0 for _ in shape))

    in_specs = ([pl.BlockSpec((TM, H), lambda i, s: (i, 0))]
                + [shared_spec(a.shape) for a in extras]
                + [pl.BlockSpec((H, TS), lambda i, s: (0, s))])
    scratch_shapes = [pltpu.VMEM((TM, H), jnp.float32)] if q_scratch else []

    # TODO(synk): grid-invariant blocks (query tile, W) could take
    # pipeline_mode=pl.Buffered(1) to halve their VMEM residency at large H.
    out = pl.pallas_call(
        functools.partial(kernel_fn, S, n_s),
        out_shape=jax.ShapeDtypeStruct((M_pad, S_pad), jnp.float32),
        grid=grid,
        in_specs=in_specs,
        out_specs=pl.BlockSpec((TM, S_pad), lambda i, s: (i, 0)),
        scratch_shapes=scratch_shapes,
        compiler_params=pltpu.CompilerParams(
            dimension_semantics=("parallel", "arbitrary")),
    )(query, *extras, hist_t)
    if M_pad == M and S_pad == S:
        return out
    return out[:M, :S]


def _attn2_impl(hidden, history, params, method):
    S, H = history.shape
    # f32 for exact parity with PyTorch defaults.
    # TODO(synk): cast history/query to bf16 (keep f32 accumulation + f32
    # softmax) to halve HBM traffic on v5e if the model tolerates it.
    hidden = hidden.astype(jnp.float32)
    history = history.astype(jnp.float32)
    if method == "dot":
        return _run_attention(_attn_qk_kernel, hidden, [], history, S)
    elif method == "general":
        w = params["attn_w"].astype(jnp.float32)                  # (H, H)
        # hidden . b is a per-row constant -> cancels under softmax; dropped.
        return _run_attention(_attn_general_kernel, hidden, [w], history, S,
                              q_scratch=True)
    elif method == "concat":
        w = params["attn_w"].astype(jnp.float32)                  # (H, 2H)
        other = params["other"].astype(jnp.float32).reshape(1, H)
        # e_i = other.(W_h hidden + W_e h_i + b); the hidden- and bias-
        # dependent terms are per-row constants that cancel under softmax.
        # The grid-invariant projection u_e = other @ W_e is hoisted here, so
        # the (H, 2H) weight never enters VMEM.  All query rows are identical
        # by construction -- this matches the reference semantics.
        q = jnp.broadcast_to(other @ w[:, H:], hidden.shape)
        return _run_attention(_attn_qk_kernel, q, [], history, S)
    else:
        raise ValueError(f"unknown method: {method}")


# ----------------------------- public wrappers -------------------------------


@functools.partial(jax.jit, static_argnames=("method",))
def attn2_forward(out_state, history, params, method="general"):
    """Module-faithful single decoder step: Attn2.forward(out_state, history) -> (1, S).

    Note: at M == 1 the call is launch-overhead bound; prefer
    attn2_forward_batched to amortize across decoder timesteps.
    """
    S, H = history.shape
    hidden = out_state.reshape(1, H)     # torch .squeeze()
    return _attn2_impl(hidden, history, params, method)


@functools.partial(jax.jit, static_argnames=("method",))
def attn2_forward_batched(out_states, history, params, method="general"):
    """Batched decoder steps: out_states (M, H) -> attention weights (M, S)."""
    H = history.shape[1]
    hidden = out_states.reshape(-1, H)
    return _attn2_impl(hidden, history, params, method)


# ------------------------- pure-JAX reference -------------------------------


def attn2_reference(hidden, history, params, method="general"):
    """hidden: (M, H); history: (S, H) -> (M, S)."""
    if method == "dot":
        e = hidden @ history.T
    elif method == "general":
        e = hidden @ (history @ params["attn_w"].T + params["attn_b"]).T
    elif method == "concat":
        M, H = hidden.shape
        S = history.shape[0]
        hid_b = jnp.broadcast_to(hidden[:, None, :], (M, S, H))
        hist_b = jnp.broadcast_to(history[None, :, :], (M, S, H))
        cat = jnp.concatenate([hid_b, hist_b], axis=-1)          # (M, S, 2H)
        e = (cat @ params["attn_w"].T + params["attn_b"]) @ params["other"]
    else:
        raise ValueError(method)
    return jax.nn.softmax(e, axis=-1)


# --------------------------------- main -------------------------------------


if __name__ == "__main__":
    hidden_size = 32
    seq_len = 8
    n_steps = 4    # batched decoder timesteps

    key = jax.random.PRNGKey(0)
    keys = jax.random.split(key, 8)

    out_state = jax.random.normal(keys[0], (1, 1, hidden_size), dtype=jnp.float32)
    history = jax.random.normal(keys[1], (seq_len, hidden_size), dtype=jnp.float32)
    out_states = jax.random.normal(keys[2], (n_steps, hidden_size), dtype=jnp.float32)

    scale = 1.0 / float(hidden_size) ** 0.5
    params_general = {
        "attn_w": jax.random.uniform(keys[3], (hidden_size, hidden_size),
                                     minval=-scale, maxval=scale),
        "attn_b": jax.random.uniform(keys[4], (hidden_size,),
                                     minval=-scale, maxval=scale),
    }
    params_concat = {
        "attn_w": jax.random.uniform(keys[5], (hidden_size, 2 * hidden_size),
                                     minval=-scale, maxval=scale),
        "attn_b": jax.random.uniform(keys[6], (hidden_size,),
                                     minval=-scale, maxval=scale),
        "other": jax.random.normal(keys[7], (hidden_size,), dtype=jnp.float32),
    }

    ok = True
    for method, params in (("dot", {}),
                           ("general", params_general),
                           ("concat", params_concat)):
        # single decoder step (matches the PyTorch module's forward)
        out = jax.block_until_ready(attn2_forward(out_state, history, params,
                                                  method=method))
        ref = attn2_reference(out_state.reshape(1, hidden_size), history,
                              params, method=method)
        ok &= out.shape == (1, seq_len)
        ok &= bool(jnp.allclose(out, ref, atol=1e-5, rtol=1e-5))

        # batched decoder steps: one pallas_call for all queries
        outb = jax.block_until_ready(attn2_forward_batched(out_states, history,
                                                           params, method=method))
        refb = attn2_reference(out_states, history, params, method=method)
        ok &= outb.shape == (n_steps, seq_len)
        ok &= bool(jnp.allclose(outb, refb, atol=1e-5, rtol=1e-5))

    print("KERNEL_OK" if ok else "KERNEL_MISMATCH")
</pallas_src>

<mosaic_0001>
module attributes {stable_mosaic.version = 11 : i64} {
  func.func @_attn_qk_kernel(%arg0: i32, %arg1: i32, %arg2: memref<8x32xf32, #tpu.memory_space<vmem>>, %arg3: memref<32x128xf32, #tpu.memory_space<vmem>>, %arg4: memref<8x128xf32, #tpu.memory_space<vmem>>) attributes {dimension_semantics = [#tpu.dimension_semantics<parallel>, #tpu.dimension_semantics<arbitrary>], iteration_bounds = array<i64: 1, 1>, scalar_prefetch = 0 : i64, scratch_operands = 0 : i64, tpu.core_type = #tpu.core_type<tc>, window_params = [{transform_indices = @transform_0, window_bounds = array<i64: 8, 32>}, {transform_indices = @transform_1, window_bounds = array<i64: 32, 128>}, {transform_indices = @transform_2, window_bounds = array<i64: 8, 128>}]} {
    %c0 = arith.constant 0 : index
    %c0_0 = arith.constant 0 : index
    %0 = vector.load %arg2[%c0, %c0_0] : memref<8x32xf32, #tpu.memory_space<vmem>>, vector<8x32xf32>
    %c0_1 = arith.constant 0 : index
    %c0_2 = arith.constant 0 : index
    %1 = vector.load %arg3[%c0_1, %c0_2] : memref<32x128xf32, #tpu.memory_space<vmem>>, vector<32x128xf32>
    %cst = arith.constant dense<0.000000e+00> : vector<8x128xf32>
    %2 = tpu.matmul %0, %1, %cst {dimension_numbers = #tpu.dot_dimension_numbers<[1], [0], [0], [1], [0, 0, 1, 1], [], []>} : vector<8x32xf32>, vector<32x128xf32>, vector<8x128xf32> -> vector<8x128xf32>
    %3 = tpu.iota {dimensions = array<i32: 1>} : vector<8x128xi32>
    %c8_i32 = arith.constant 8 : i32
    %4 = vector.broadcast %c8_i32 : i32 to vector<8x128xi32>
    %5 = arith.cmpi slt, %3, %4 : vector<8x128xi32>
    %cst_3 = arith.constant 0xFF800000 : f32
    %6 = vector.broadcast %cst_3 : f32 to vector<8x128xf32>
    %7 = arith.select %5, %2, %6 : vector<8x128xi1>, vector<8x128xf32>
    %cst_4 = arith.constant dense<0xFF800000> : vector<8xf32>
    %8 = vector.multi_reduction <maximumf>, %7, %cst_4 [1] : vector<8x128xf32> to vector<8xf32>
    %9 = vector.shape_cast %8 : vector<8xf32> to vector<8x1xf32>
    %10 = vector.broadcast %9 : vector<8x1xf32> to vector<8x128xf32>
    %11 = arith.subf %7, %10 : vector<8x128xf32>
    %12 = math.exp %11 : vector<8x128xf32>
    %cst_5 = arith.constant dense<0.000000e+00> : vector<8xf32>
    %13 = vector.multi_reduction <add>, %12, %cst_5 [1] : vector<8x128xf32> to vector<8xf32>
    %14 = vector.shape_cast %13 : vector<8xf32> to vector<8x1xf32>
    %15 = tpu.reciprocal %14 : vector<8x1xf32> -> vector<8x1xf32>
    %16 = vector.broadcast %15 : vector<8x1xf32> to vector<8x128xf32>
    %17 = arith.mulf %12, %16 : vector<8x128xf32>
    %c0_6 = arith.constant 0 : index
    %c0_7 = arith.constant 0 : index
    %18 = vector.load %arg4[%c0_6, %c0_7] : memref<8x128xf32, #tpu.memory_space<vmem>>, vector<8x128xf32>
    tpu.vector_store %arg4[%c0_6, %c0_7], %17 {strides = array<i32>} : memref<8x128xf32, #tpu.memory_space<vmem>>, vector<8x128xf32>,
    return
  }
  func.func @transform_0(%arg0: i32, %arg1: i32) -> (i32, i32) {
    %c0_i32 = arith.constant 0 : i32
    %c0_i32_0 = arith.constant 0 : i32
    return %arg0, %c0_i32 : i32, i32
  }
  func.func @transform_1(%arg0: i32, %arg1: i32) -> (i32, i32) {
    %c0_i32 = arith.constant 0 : i32
    %c0_i32_0 = arith.constant 0 : i32
    return %c0_i32, %arg1 : i32, i32
  }
  func.func @transform_2(%arg0: i32, %arg1: i32) -> (i32, i32) {
    %c0_i32 = arith.constant 0 : i32
    %c0_i32_0 = arith.constant 0 : i32
    return %arg0, %c0_i32 : i32, i32
  }
}

</mosaic_0001>

<llo_original>
// kernel: attn2_forward.1
$region0: #{attn2_forward.1}
  #allocation0 [shape = 'u32[]', space=smem, size = 0x4, offset = 0x4, fixed_abs, tag = 'smem constant byte address 0x4 - core index']
  #allocation1 [shape = 'u32[144,128]{1,0:T(1,128)}', space=vmem, size = 0x12000, scoped, tag = 'internal scratch']
  %s0 = inlined_call_operand.vmem [shape: f32[8,32], index: 0, kind: input, shape index: {}]
  %s1 = inlined_call_operand.vmem [shape: f32[32,128], index: 1, kind: input, shape index: {}]
  %s2 = inlined_call_operand.vmem [shape: f32[8,128], index: 2, kind: output, shape index: {}]
  %s3 = sld [smem:[#allocation0]]
  $region18: #{attn2_forward.1} parent=0
    _
  %s5 = ssub.s32 1, %s3
  %s6 = scalar_select 0, %s5, %s3
  // Predicated region
  $region2: #{attn2_forward.1} parent=0 // pred_check
    _
  $region3: #{attn2_forward.1} parent=0 // pred_check_branch
    %8 = sbr.rel (0) target = $region5
  $region4: #{attn2_forward.1} parent=0 // pred_region
    _
  $region5: #{attn2_forward.1} parent=0 // pred_fallthru
    _
  // Predicated region
  $region6: #{attn2_forward.1} parent=0 // pred_check
    _
  $region7: #{attn2_forward.1} parent=0 // pred_check_branch
    %10 = sbr.rel (0) target = $region9
  $region8: #{attn2_forward.1} parent=0 // pred_region
    _
  $region9: #{attn2_forward.1} parent=0 // pred_fallthru
    _
  %v11 = vld [vmem:[%s0] sm:$0xff]
  %v12 = vld [vmem:[%s1] sm:$0xff]
  %v13 = vld [vmem:[%s1 + $0x8] sm:$0xff]
  %v14 = vld [vmem:[%s1 + $0x10] sm:$0xff]
  %v15 = vld [vmem:[%s1 + $0x18] sm:$0xff]
  %vm16 = vcmask 261120
  %v18 = vsel %vm16, %v11, 0
  %20 = vmatprep.subr.mxu0 0.0
  %21 = vmatpush1.msra.mxu0 0.0
  %22 = vmatprep.subr.mxu0 0.0
  %23 = vmatpush1.msra.mxu0 0.0
  %24 = vmatprep.subr.mxu0 0.0
  %25 = vmatpush1.msra.mxu0 0.0
  %26 = vmatprep.subr.mxu0 0.0
  %27 = vmatpush1.msra.mxu0 0.0
  %28 = vmatprep.subr.mxu0 0.0
  %29 = vmatpush1.msra.mxu0 0.0
  %30 = vmatprep.subr.mxu0 0.0
  %31 = vmatpush1.msra.mxu0 0.0
  %32 = vmatprep.subr.mxu0 0.0
  %33 = vmatpush1.msra.mxu0 0.0
  %34 = vmatprep.subr.mxu0 0.0
  %35 = vmatpush1.msra.mxu0 0.0
  %36 = vmatprep.subr.mxu0 0.0
  %37 = vmatpush1.msra.mxu0 0.0
  %38 = vmatprep.subr.mxu0 0.0
  %39 = vmatpush1.msra.mxu0 0.0
  %40 = vmatprep.subr.mxu0 0.0
  %41 = vmatpush1.msra.mxu0 0.0
  %42 = vmatprep.subr.mxu0 0.0
  %43 = vmatpush1.msra.mxu0 0.0
  %44 = vmatprep.subr.mxu0 0.0
  %45 = vmatpush1.msra.mxu0 %v15
  %46 = vmatprep.subr.mxu0 0.0
  %47 = vmatpush1.msra.mxu0 %v14
  %48 = vmatprep.subr.mxu0 0.0
  %49 = vmatpush1.msra.mxu0 %v13
  %50 = vmatprep.subr.mxu0 0.0
  %51 = vmatpush1.msra.mxu0 %v12
  %52 = vmatprep.subr.mxu0 0.0
  %53 = vmatpush2.msra.mxu0 0.0
  %54 = vmatprep.subr.mxu0 0.0
  %55 = vmatpush2.msra.mxu0 0.0
  %56 = vmatprep.subr.mxu0 0.0
  %57 = vmatpush2.msra.mxu0 0.0
  %58 = vmatprep.subr.mxu0 0.0
  %59 = vmatpush2.msra.mxu0 0.0
  %60 = vmatprep.subr.mxu0 0.0
  %61 = vmatpush2.msra.mxu0 0.0
  %62 = vmatprep.subr.mxu0 0.0
  %63 = vmatpush2.msra.mxu0 0.0
  %64 = vmatprep.subr.mxu0 0.0
  %65 = vmatpush2.msra.mxu0 0.0
  %66 = vmatprep.subr.mxu0 0.0
  %67 = vmatpush2.msra.mxu0 0.0
  %68 = vmatprep.subr.mxu0 0.0
  %69 = vmatpush2.msra.mxu0 0.0
  %70 = vmatprep.subr.mxu0 0.0
  %71 = vmatpush2.msra.mxu0 0.0
  %72 = vmatprep.subr.mxu0 0.0
  %73 = vmatpush2.msra.mxu0 0.0
  %74 = vmatprep.subr.mxu0 0.0
  %75 = vmatpush2.msra.mxu0 0.0
  %76 = vmatprep.subr.mxu0 0.0
  %77 = vmatpush2.msra.mxu0 0.0
  %78 = vmatprep.subr.mxu0 0.0
  %79 = vmatpush2.msra.mxu0 0.0
  %80 = vmatprep.subr.mxu0 0.0
  %81 = vmatpush2.msra.mxu0 0.0
  %82 = vmatprep.subr.mxu0 0.0
  %83 = vmatpush2.msra.mxu0 0.0
  %84 = vmatprep.mubr.f32.mxu0 0.0
  %85 = vmatmul.mubr.f32.gmra.mxu0 %v18
  %v86 = vpop.f32.mrf.mxu0
  %v87 = vadd.f32 0.0, %v86
  %v88 = vpop.f32.mrf.mxu0
  %89 = vdwg.mxu0
  %v90 = vlaneseq
  %v91 = vand.u32 %v90, 127
  %vm92 = vcmp.lt.s32.totalorder %v91, 8
  %v93 = vsel %vm92, %v87, -inf
  %94 = vmax.xlane.f32.xlu0 %v93
  %v95 = vpop.xlane.xlu0 %94
  %v96 = vsub.f32 %v93, %v95
  %v97 = vmul.f32 %v96, 1.442695
  %v98 = vpow.pop %v97
  %99 = vadd.xlane.f32.xlu0 %v98
  %v100 = vpop.xlane.xlu0 %99
  %v101 = vrcp.pop %v100
  %v102 = vmul.f32 %v98, %v101
  %103 = vst [vmem:[%s2] sm:$0xff] %v102
  // Predicated region
  $region10: #{attn2_forward.1} parent=0 // pred_check
    _
  $region11: #{attn2_forward.1} parent=0 // pred_check_branch
    %105 = sbr.rel (0) target = $region13
  $region12: #{attn2_forward.1} parent=0 // pred_region
    _
  $region13: #{attn2_forward.1} parent=0 // pred_fallthru
    _
  // Predicated region
  $region14: #{attn2_forward.1} parent=0 // pred_check
    _
  $region15: #{attn2_forward.1} parent=0 // pred_check_branch
    %107 = sbr.rel (0) target = $region17
  $region16: #{attn2_forward.1} parent=0 // pred_region
    _
  $region17: #{attn2_forward.1} parent=0 // pred_fallthru
    _

</llo_original>
